<compile_context>
chip_gen: v5e
topology: v5e:2x2
jax: 0.10.0
libtpu: 0.0.40
codegen_flags: <defaults>
</compile_context>

<pallas_src>
import functools

import jax
import jax.numpy as jnp
from jax import lax
from jax.experimental import pallas as pl
from jax.experimental.pallas import tpu as pltpu


def _round_up(a: int, m: int) -> int:
    return ((a + m - 1) // m) * m


def _var_encoder_kernel(x_ref, m_ref, wb_ref, o_ref, *, k: int):
    # x_ref/m_ref : (T, k) lane-dense row tiles
    # wb_ref      : (2k, k*D) consolidated [Wblk ; Bblk] block-diagonal operand
    # o_ref       : (T, k*D) lane-dense output tile
    xf = x_ref[...].astype(jnp.float32)
    mf = m_ref[...].astype(jnp.float32)
    wb = wb_ref[...]                      # (2k, kD) f32
    w_blk = wb[:k, :]                     # (k, kD): w_blk[i, i*D+d] = W[d]
    b_blk = wb[k:, :]                     # (k, kD): b_blk[i, i*D+d] = bias[d]

    # (x*W + b) * m  ==  (x*m) @ Wblk + m @ Bblk   (block-diagonal expansion)
    acc = jnp.dot(xf * mf, w_blk,
                  preferred_element_type=jnp.float32,
                  precision=lax.Precision.HIGHEST)
    acc = acc + jnp.dot(mf, b_blk,
                        preferred_element_type=jnp.float32,
                        precision=lax.Precision.HIGHEST)
    o_ref[...] = acc.astype(o_ref.dtype)


def var_encoder_forward(x, non_pad_mask, weight, bias, *,
                        row_tile=None, out_dtype=None):
    """x: (b, l, k), non_pad_mask: (b, l, k), weight: (D, 1), bias: (D,)."""
    b, l, k = x.shape
    D = weight.shape[0]
    kD = k * D
    G = b * l
    if out_dtype is None:
        out_dtype = x.dtype

    # Lane-dense inputs: rows = b*l, lanes = k (instead of (N,1) single-lane).
    x2 = x.reshape(G, k)
    m2 = jnp.asarray(non_pad_mask, dtype=x.dtype).reshape(G, k)

    # Consolidated weight/bias operand: one (2k, kD) tile, constant index_map.
    w_row = weight.reshape(1, D).astype(jnp.float32)
    b_row = bias.reshape(1, D).astype(jnp.float32)
    eye_k = jnp.eye(k, dtype=jnp.float32)
    w_blk = jnp.kron(eye_k, w_row)        # (k, kD), block-diagonal copies of W
    b_blk = jnp.kron(eye_k, b_row)        # (k, kD), block-diagonal copies of b
    wb = jnp.concatenate([w_blk, b_blk], axis=0)   # (2k, kD)

    # Row tiling: fixed 512-row tiles (multiple of 16 for f32/bf16 packing) so
    # the grid pipelines; small problems collapse to a single padded tile.
    if row_tile is None:
        row_tile = 512 if G >= 512 else G
    row_tile = max(16, _round_up(int(row_tile), 16))
    G_pad = _round_up(G, row_tile)
    if G_pad != G:
        pad = G_pad - G
        x2 = jnp.pad(x2, ((0, pad), (0, 0)))
        m2 = jnp.pad(m2, ((0, pad), (0, 0)))   # mask=0 -> padded rows produce 0

    kernel = functools.partial(_var_encoder_kernel, k=k)

    out_flat = pl.pallas_call(
        kernel,
        out_shape=jax.ShapeDtypeStruct((G_pad, kD), out_dtype),
        grid_spec=pltpu.PrefetchScalarGridSpec(
            num_scalar_prefetch=0,
            grid=(G_pad // row_tile,),
            in_specs=[
                pl.BlockSpec((row_tile, k), lambda i: (i, 0)),   # x rows
                pl.BlockSpec((row_tile, k), lambda i: (i, 0)),   # mask rows
                pl.BlockSpec((2 * k, kD), lambda i: (0, 0)),     # [W;b] blocks
            ],
            out_specs=pl.BlockSpec((row_tile, kD), lambda i: (i, 0)),
        ),
        compiler_params=pltpu.CompilerParams(
            dimension_semantics=("parallel",)),
    )(x2, m2, wb)

    return out_flat[:G].reshape(b, l, k, D)


def reference_forward(x, non_pad_mask, weight, bias):
    # pure-JAX reference of the PyTorch forward
    x4 = x[..., None]                       # (b, l, k, 1)
    m4 = non_pad_mask[..., None]            # (b, l, k, 1)
    y = x4 * weight.reshape(1, 1, 1, -1) + bias.reshape(1, 1, 1, -1)
    return y * m4


if __name__ == "__main__":
    # small shapes consistent with the module: batch=2, seq len=8, num vars k=4
    b, l, k = 2, 8, 4
    output_dim = 32     # k * output_dim = 128 -> exactly lane-dense output

    key = jax.random.PRNGKey(0)
    kx, km, kw, kb = jax.random.split(key, 4)

    x = jax.random.normal(kx, (b, l, k), dtype=jnp.float32)
    non_pad_mask = (jax.random.uniform(km, (b, l, k)) > 0.3).astype(jnp.float32)

    # deterministic Linear(1, output_dim) init
    weight = jax.random.uniform(kw, (output_dim, 1), minval=-1.0, maxval=1.0,
                                dtype=jnp.float32)
    bias = jax.random.uniform(kb, (output_dim,), minval=-1.0, maxval=1.0,
                              dtype=jnp.float32)

    # --- f32, small shape (single padded tile) ---
    out = var_encoder_forward(x, non_pad_mask, weight, bias)
    out = jax.block_until_ready(out)
    ref = reference_forward(x, non_pad_mask, weight, bias)
    assert out.shape == (b, l, k, output_dim)
    assert jnp.allclose(out, ref, atol=1e-4, rtol=1e-4)

    # --- f32, larger shape (multi-step pipelined grid + row padding) ---
    b2, l2 = 4, 300                      # G = 1200 -> row_tile 512, grid of 3
    x_big = jax.random.normal(kx, (b2, l2, k), dtype=jnp.float32)
    m_big = (jax.random.uniform(km, (b2, l2, k)) > 0.3).astype(jnp.float32)
    out_big = jax.block_until_ready(
        var_encoder_forward(x_big, m_big, weight, bias))
    ref_big = reference_forward(x_big, m_big, weight, bias)
    assert out_big.shape == (b2, l2, k, output_dim)
    assert jnp.allclose(out_big, ref_big, atol=1e-4, rtol=1e-4)

    # --- bf16 input/output path (halved store traffic; f32 compute in-kernel) ---
    out_bf16 = jax.block_until_ready(
        var_encoder_forward(x.astype(jnp.bfloat16), non_pad_mask, weight, bias))
    assert out_bf16.dtype == jnp.bfloat16
    assert jnp.allclose(out_bf16.astype(jnp.float32), ref, atol=5e-2, rtol=5e-2)

    print("KERNEL_OK")
</pallas_src>

<mosaic_0001>
module attributes {stable_mosaic.version = 11 : i64} {
  func.func @_var_encoder_kernel(%arg0: i32, %arg1: memref<16x4xf32, #tpu.memory_space<vmem>>, %arg2: memref<16x4xf32, #tpu.memory_space<vmem>>, %arg3: memref<8x128xf32, #tpu.memory_space<vmem>>, %arg4: memref<16x128xf32, #tpu.memory_space<vmem>>) attributes {dimension_semantics = [#tpu.dimension_semantics<parallel>], iteration_bounds = array<i64: 1>, scalar_prefetch = 0 : i64, scratch_operands = 0 : i64, tpu.core_type = #tpu.core_type<tc>, window_params = [{transform_indices = @transform_0, window_bounds = array<i64: 16, 4>}, {transform_indices = @transform_1, window_bounds = array<i64: 16, 4>}, {pipeline_mode = #tpu.pipeline_mode<synchronous>, transform_indices = @transform_2, window_bounds = array<i64: 8, 128>}, {transform_indices = @transform_3, window_bounds = array<i64: 16, 128>}]} {
    %c0 = arith.constant 0 : index
    %c0_0 = arith.constant 0 : index
    %0 = vector.load %arg1[%c0, %c0_0] : memref<16x4xf32, #tpu.memory_space<vmem>>, vector<16x4xf32>
    %c0_1 = arith.constant 0 : index
    %c0_2 = arith.constant 0 : index
    %1 = vector.load %arg2[%c0_1, %c0_2] : memref<16x4xf32, #tpu.memory_space<vmem>>, vector<16x4xf32>
    %c0_3 = arith.constant 0 : index
    %c0_4 = arith.constant 0 : index
    %2 = vector.load %arg3[%c0_3, %c0_4] : memref<8x128xf32, #tpu.memory_space<vmem>>, vector<8x128xf32>
    %3 = vector.extract_strided_slice %2 {offsets = [0, 0], sizes = [4, 128], strides = [1, 1]} : vector<8x128xf32> to vector<4x128xf32>
    %4 = vector.extract_strided_slice %2 {offsets = [4, 0], sizes = [4, 128], strides = [1, 1]} : vector<8x128xf32> to vector<4x128xf32>
    %5 = arith.mulf %0, %1 : vector<16x4xf32>
    %cst = arith.constant dense<0.000000e+00> : vector<16x128xf32>
    %6 = tpu.matmul %5, %3, %cst {dimension_numbers = #tpu.dot_dimension_numbers<[1], [0], [0], [1], [0, 0, 1, 1], [], []>, precision = #tpu.contract_precision<fp32>} : vector<16x4xf32>, vector<4x128xf32>, vector<16x128xf32> -> vector<16x128xf32>
    %cst_5 = arith.constant dense<0.000000e+00> : vector<16x128xf32>
    %7 = tpu.matmul %1, %4, %cst_5 {dimension_numbers = #tpu.dot_dimension_numbers<[1], [0], [0], [1], [0, 0, 1, 1], [], []>, precision = #tpu.contract_precision<fp32>} : vector<16x4xf32>, vector<4x128xf32>, vector<16x128xf32> -> vector<16x128xf32>
    %8 = arith.addf %6, %7 : vector<16x128xf32>
    %c0_6 = arith.constant 0 : index
    %c0_7 = arith.constant 0 : index
    %9 = vector.load %arg4[%c0_6, %c0_7] : memref<16x128xf32, #tpu.memory_space<vmem>>, vector<16x128xf32>
    tpu.vector_store %arg4[%c0_6, %c0_7], %8 {strides = array<i32>} : memref<16x128xf32, #tpu.memory_space<vmem>>, vector<16x128xf32>,
    return
  }
  func.func @transform_0(%arg0: i32) -> (i32, i32) {
    %c0_i32 = arith.constant 0 : i32
    %c0_i32_0 = arith.constant 0 : i32
    return %arg0, %c0_i32 : i32, i32
  }
  func.func @transform_1(%arg0: i32) -> (i32, i32) {
    %c0_i32 = arith.constant 0 : i32
    %c0_i32_0 = arith.constant 0 : i32
    return %arg0, %c0_i32 : i32, i32
  }
  func.func @transform_2(%arg0: i32) -> (i32, i32) {
    %c0_i32 = arith.constant 0 : i32
    %c0_i32_0 = arith.constant 0 : i32
    %c0_i32_1 = arith.constant 0 : i32
    return %c0_i32, %c0_i32_0 : i32, i32
  }
  func.func @transform_3(%arg0: i32) -> (i32, i32) {
    %c0_i32 = arith.constant 0 : i32
    %c0_i32_0 = arith.constant 0 : i32
    return %arg0, %c0_i32 : i32, i32
  }
}

</mosaic_0001>

<llo_original>
// kernel: tpu_custom_call.1
$region0: #{tpu_custom_call.1}
  #allocation0 [shape = 'u32[]', space=smem, size = 0x4, offset = 0x4, fixed_abs, tag = 'smem constant byte address 0x4 - core index']
  #allocation1 [shape = 'u32[72,128]{1,0:T(1,128)}', space=vmem, size = 0x9000, scoped, tag = 'internal scratch']
  %s0 = inlined_call_operand.vmem [shape: f32[16,4], index: 0, kind: input, shape index: {}]
  %s1 = inlined_call_operand.vmem [shape: f32[16,4], index: 1, kind: input, shape index: {}]
  %s2 = inlined_call_operand.vmem [shape: f32[8,128], index: 2, kind: input, shape index: {}]
  %s3 = inlined_call_operand.hbm [shape: f32[16,128], index: 3, kind: output, shape index: {}]
  %s4 = sld [smem:[#allocation0]]
  $region22: #{tpu_custom_call.1} parent=0
    _
  %s6 = ssub.s32 1, %s4
  %s7 = scalar_select 0, %s6, %s4
  $region1: #{tpu_custom_call.1} parent=0
    #allocation2 [shape = 'u8[8192]{0}', space=vmem, size = 0x2000, scoped, tag = 'output window, operand 0, single buffered']
    #allocation3 [shape = 's32[1]{0}', space=sflag, size = 0x4, scoped, tag = 'scoped memory for tpu_custom_call.1']
    %8 = vsyncpa [#allocation3], 0
    // Predicated region
    $region2: #{tpu_custom_call.1} parent=1 // pred_check
      _
    $region3: #{tpu_custom_call.1} parent=1 // pred_check_branch
      %10 = sbr.rel (0) target = $region5
    $region4: #{tpu_custom_call.1} parent=1 // pred_region
      _
    $region5: #{tpu_custom_call.1} parent=1 // pred_fallthru
      _
    // Predicated region
    $region6: #{tpu_custom_call.1} parent=1 // pred_check
      _
    $region7: #{tpu_custom_call.1} parent=1 // pred_check_branch
      %12 = sbr.rel (0) target = $region9
    $region8: #{tpu_custom_call.1} parent=1 // pred_region
      _
    $region9: #{tpu_custom_call.1} parent=1 // pred_fallthru
      _
    // Predicated region
    $region10: #{tpu_custom_call.1} parent=1 // pred_check
      _
    $region11: #{tpu_custom_call.1} parent=1 // pred_check_branch
      %14 = sbr.rel (0) target = $region13
    $region12: #{tpu_custom_call.1} parent=1 // pred_region
      _
    $region13: #{tpu_custom_call.1} parent=1 // pred_fallthru
      _
    %v15 = vld [vmem:[%s0] sm:$0xff]
    %v16 = vld [vmem:[%s0 + $0x8] sm:$0xff]
    %v17 = vld [vmem:[%s1] sm:$0xff]
    %v18 = vld [vmem:[%s1 + $0x8] sm:$0xff]
    %v19 = vld [vmem:[%s2] sm:$0xff]
    %v20 = vmul.f32 %v15, %v17
    %v21 = vmul.f32 %v16, %v18
    %v23 = vrot.slane %v19, 4
    %vm24 = vcmask 31744
    %v26 = vsel %vm24, %v17, 0
    %v29 = vsel %vm24, %v18, 0
    %vm31 = vcmask 1043456
    %v32 = vsel %vm31, %v23, 0
    %34 = vmatpush.msra.mxu0 0.0
    %35 = vmatpush.msra.mxu0 0.0
    %36 = vmatpush.msra.mxu0 0.0
    %37 = vmatpush.msra.mxu0 0.0
    %38 = vmatpush.msra.mxu0 0.0
    %39 = vmatpush.msra.mxu0 0.0
    %40 = vmatpush.msra.mxu0 0.0
    %41 = vmatpush.msra.mxu0 0.0
    %42 = vmatpush.msra.mxu0 0.0
    %43 = vmatpush.msra.mxu0 0.0
    %44 = vmatpush.msra.mxu0 0.0
    %45 = vmatpush.msra.mxu0 0.0
    %46 = vmatpush.msra.mxu0 0.0
    %47 = vmatpush.msra.mxu0 0.0
    %48 = vmatpush.msra.mxu0 0.0
    %v49 = vand.u32 %v32, 4294901760
    %50 = vmatpush.msra.mxu0 %v49
    %v51 = vand.u32 %v26, 4294901760
    %v52 = vsub.f32 %v26, %v51
    %v53 = vand.u32 %v52, 4294901760
    %v54 = vsub.f32 %v52, %v53
    %v55 = vand.u32 %v54, 4294901760
    %56 = vmatmul.f32.gmra.mxu0 %v55
    %v57 = vpop.f32.mrf.mxu0
    %v58 = vadd.f32 0.0, %v57
    %v59 = vand.u32 %v29, 4294901760
    %v60 = vsub.f32 %v29, %v59
    %v61 = vand.u32 %v60, 4294901760
    %v62 = vsub.f32 %v60, %v61
    %v63 = vand.u32 %v62, 4294901760
    %64 = vmatmul.f32.gmra.mxu0 %v63
    %v65 = vpop.f32.mrf.mxu0
    %v66 = vadd.f32 0.0, %v65
    %67 = vdwg.mxu0
    %68 = vmatpush.msra.mxu0 0.0
    %69 = vmatpush.msra.mxu0 0.0
    %70 = vmatpush.msra.mxu0 0.0
    %71 = vmatpush.msra.mxu0 0.0
    %72 = vmatpush.msra.mxu0 0.0
    %73 = vmatpush.msra.mxu0 0.0
    %74 = vmatpush.msra.mxu0 0.0
    %75 = vmatpush.msra.mxu0 0.0
    %76 = vmatpush.msra.mxu0 0.0
    %77 = vmatpush.msra.mxu0 0.0
    %78 = vmatpush.msra.mxu0 0.0
    %79 = vmatpush.msra.mxu0 0.0
    %80 = vmatpush.msra.mxu0 0.0
    %81 = vmatpush.msra.mxu0 0.0
    %82 = vmatpush.msra.mxu0 0.0
    %v83 = vand.u32 %v32, 4294901760
    %v84 = vsub.f32 %v32, %v83
    %v85 = vand.u32 %v84, 4294901760
    %v86 = vsub.f32 %v84, %v85
    %v87 = vand.u32 %v86, 4294901760
    %88 = vmatpush.msra.mxu0 %v87
    %v89 = vand.u32 %v26, 4294901760
    %90 = vmatmul.f32.gmra.mxu0 %v89
    %v91 = vpop.f32.mrf.mxu0
    %v92 = vadd.f32 %v58, %v91
    %v93 = vand.u32 %v29, 4294901760
    %94 = vmatmul.f32.gmra.mxu0 %v93
    %v95 = vpop.f32.mrf.mxu0
    %v96 = vadd.f32 %v66, %v95
    %97 = vdwg.mxu0
    %98 = vmatpush.msra.mxu0 0.0
    %99 = vmatpush.msra.mxu0 0.0
    %100 = vmatpush.msra.mxu0 0.0
    %101 = vmatpush.msra.mxu0 0.0
    %102 = vmatpush.msra.mxu0 0.0
    %103 = vmatpush.msra.mxu0 0.0
    %104 = vmatpush.msra.mxu0 0.0
    %105 = vmatpush.msra.mxu0 0.0
    %106 = vmatpush.msra.mxu0 0.0
    %107 = vmatpush.msra.mxu0 0.0
    %108 = vmatpush.msra.mxu0 0.0
    %109 = vmatpush.msra.mxu0 0.0
    %110 = vmatpush.msra.mxu0 0.0
    %111 = vmatpush.msra.mxu0 0.0
    %112 = vmatpush.msra.mxu0 0.0
    %v113 = vand.u32 %v32, 4294901760
    %v114 = vsub.f32 %v32, %v113
    %115 = vmatpush.msra.mxu0 %v114
    %v116 = vand.u32 %v26, 4294901760
    %v117 = vsub.f32 %v26, %v116
    %118 = vmatmul.f32.gmra.mxu0 %v117
    %v119 = vpop.f32.mrf.mxu0
    %v120 = vadd.f32 %v92, %v119
    %v121 = vand.u32 %v29, 4294901760
    %v122 = vsub.f32 %v29, %v121
    %123 = vmatmul.f32.gmra.mxu0 %v122
    %v124 = vpop.f32.mrf.mxu0
    %v125 = vadd.f32 %v96, %v124
    %126 = vdwg.mxu0
    %127 = vmatpush.msra.mxu0 0.0
    %128 = vmatpush.msra.mxu0 0.0
    %129 = vmatpush.msra.mxu0 0.0
    %130 = vmatpush.msra.mxu0 0.0
    %131 = vmatpush.msra.mxu0 0.0
    %132 = vmatpush.msra.mxu0 0.0
    %133 = vmatpush.msra.mxu0 0.0
    %134 = vmatpush.msra.mxu0 0.0
    %135 = vmatpush.msra.mxu0 0.0
    %136 = vmatpush.msra.mxu0 0.0
    %137 = vmatpush.msra.mxu0 0.0
    %138 = vmatpush.msra.mxu0 0.0
    %139 = vmatpush.msra.mxu0 0.0
    %140 = vmatpush.msra.mxu0 0.0
    %141 = vmatpush.msra.mxu0 0.0
    %v142 = vand.u32 %v32, 4294901760
    %143 = vmatpush.msra.mxu0 %v142
    %v144 = vand.u32 %v26, 4294901760
    %v145 = vsub.f32 %v26, %v144
    %v146 = vand.u32 %v145, 4294901760
    %147 = vmatmul.f32.gmra.mxu0 %v146
    %v148 = vpop.f32.mrf.mxu0
    %v149 = vadd.f32 %v120, %v148
    %v150 = vand.u32 %v29, 4294901760
    %v151 = vsub.f32 %v29, %v150
    %v152 = vand.u32 %v151, 4294901760
    %153 = vmatmul.f32.gmra.mxu0 %v152
    %v154 = vpop.f32.mrf.mxu0
    %v155 = vadd.f32 %v125, %v154
    %156 = vdwg.mxu0
    %157 = vmatpush.msra.mxu0 0.0
    %158 = vmatpush.msra.mxu0 0.0
    %159 = vmatpush.msra.mxu0 0.0
    %160 = vmatpush.msra.mxu0 0.0
    %161 = vmatpush.msra.mxu0 0.0
    %162 = vmatpush.msra.mxu0 0.0
    %163 = vmatpush.msra.mxu0 0.0
    %164 = vmatpush.msra.mxu0 0.0
    %165 = vmatpush.msra.mxu0 0.0
    %166 = vmatpush.msra.mxu0 0.0
    %167 = vmatpush.msra.mxu0 0.0
    %168 = vmatpush.msra.mxu0 0.0
    %169 = vmatpush.msra.mxu0 0.0
    %170 = vmatpush.msra.mxu0 0.0
    %171 = vmatpush.msra.mxu0 0.0
    %v172 = vand.u32 %v32, 4294901760
    %v173 = vsub.f32 %v32, %v172
    %v174 = vand.u32 %v173, 4294901760
    %175 = vmatpush.msra.mxu0 %v174
    %v176 = vand.u32 %v26, 4294901760
    %177 = vmatmul.f32.gmra.mxu0 %v176
    %v178 = vpop.f32.mrf.mxu0
    %v179 = vadd.f32 %v149, %v178
    %v180 = vand.u32 %v29, 4294901760
    %181 = vmatmul.f32.gmra.mxu0 %v180
    %v182 = vpop.f32.mrf.mxu0
    %v183 = vadd.f32 %v155, %v182
    %184 = vdwg.mxu0
    %185 = vmatpush.msra.mxu0 0.0
    %186 = vmatpush.msra.mxu0 0.0
    %187 = vmatpush.msra.mxu0 0.0
    %188 = vmatpush.msra.mxu0 0.0
    %189 = vmatpush.msra.mxu0 0.0
    %190 = vmatpush.msra.mxu0 0.0
    %191 = vmatpush.msra.mxu0 0.0
    %192 = vmatpush.msra.mxu0 0.0
    %193 = vmatpush.msra.mxu0 0.0
    %194 = vmatpush.msra.mxu0 0.0
    %195 = vmatpush.msra.mxu0 0.0
    %196 = vmatpush.msra.mxu0 0.0
    %197 = vmatpush.msra.mxu0 0.0
    %198 = vmatpush.msra.mxu0 0.0
    %199 = vmatpush.msra.mxu0 0.0
    %v200 = vand.u32 %v32, 4294901760
    %201 = vmatpush.msra.mxu0 %v200
    %v202 = vand.u32 %v26, 4294901760
    %203 = vmatmul.f32.gmra.mxu0 %v202
    %v204 = vpop.f32.mrf.mxu0
    %v205 = vadd.f32 %v179, %v204
    %v206 = vand.u32 %v29, 4294901760
    %207 = vmatmul.f32.gmra.mxu0 %v206
    %v208 = vpop.f32.mrf.mxu0
    %v209 = vadd.f32 %v183, %v208
    %210 = vdwg.mxu0
    %v212 = vsel %vm24, %v20, 0
    %v215 = vsel %vm24, %v21, 0
    %v217 = vsel %vm31, %v19, 0
    %219 = vmatpush.msra.mxu0 0.0
    %220 = vmatpush.msra.mxu0 0.0
    %221 = vmatpush.msra.mxu0 0.0
    %222 = vmatpush.msra.mxu0 0.0
    %223 = vmatpush.msra.mxu0 0.0
    %224 = vmatpush.msra.mxu0 0.0
    %225 = vmatpush.msra.mxu0 0.0
    %226 = vmatpush.msra.mxu0 0.0
    %227 = vmatpush.msra.mxu0 0.0
    %228 = vmatpush.msra.mxu0 0.0
    %229 = vmatpush.msra.mxu0 0.0
    %230 = vmatpush.msra.mxu0 0.0
    %231 = vmatpush.msra.mxu0 0.0
    %232 = vmatpush.msra.mxu0 0.0
    %233 = vmatpush.msra.mxu0 0.0
    %v234 = vand.u32 %v217, 4294901760
    %235 = vmatpush.msra.mxu0 %v234
    %v236 = vand.u32 %v212, 4294901760
    %v237 = vsub.f32 %v212, %v236
    %v238 = vand.u32 %v237, 4294901760
    %v239 = vsub.f32 %v237, %v238
    %v240 = vand.u32 %v239, 4294901760
    %241 = vmatmul.f32.gmra.mxu0 %v240
    %v242 = vpop.f32.mrf.mxu0
    %v243 = vadd.f32 %v205, %v242
    %v244 = vand.u32 %v215, 4294901760
    %v245 = vsub.f32 %v215, %v244
    %v246 = vand.u32 %v245, 4294901760
    %v247 = vsub.f32 %v245, %v246
    %v248 = vand.u32 %v247, 4294901760
    %249 = vmatmul.f32.gmra.mxu0 %v248
    %v250 = vpop.f32.mrf.mxu0
    %v251 = vadd.f32 %v209, %v250
    %252 = vdwg.mxu0
    %253 = vmatpush.msra.mxu0 0.0
    %254 = vmatpush.msra.mxu0 0.0
    %255 = vmatpush.msra.mxu0 0.0
    %256 = vmatpush.msra.mxu0 0.0
    %257 = vmatpush.msra.mxu0 0.0
    %258 = vmatpush.msra.mxu0 0.0
    %259 = vmatpush.msra.mxu0 0.0
    %260 = vmatpush.msra.mxu0 0.0
    %261 = vmatpush.msra.mxu0 0.0
    %262 = vmatpush.msra.mxu0 0.0
    %263 = vmatpush.msra.mxu0 0.0
    %264 = vmatpush.msra.mxu0 0.0
    %265 = vmatpush.msra.mxu0 0.0
    %266 = vmatpush.msra.mxu0 0.0
    %267 = vmatpush.msra.mxu0 0.0
    %v268 = vand.u32 %v217, 4294901760
    %v269 = vsub.f32 %v217, %v268
    %v270 = vand.u32 %v269, 4294901760
    %v271 = vsub.f32 %v269, %v270
    %v272 = vand.u32 %v271, 4294901760
    %273 = vmatpush.msra.mxu0 %v272
    %v274 = vand.u32 %v212, 4294901760
    %275 = vmatmul.f32.gmra.mxu0 %v274
    %v276 = vpop.f32.mrf.mxu0
    %v277 = vadd.f32 %v243, %v276
    %v278 = vand.u32 %v215, 4294901760
    %279 = vmatmul.f32.gmra.mxu0 %v278
    %v280 = vpop.f32.mrf.mxu0
    %v281 = vadd.f32 %v251, %v280
    %282 = vdwg.mxu0
    %283 = vmatpush.msra.mxu0 0.0
    %284 = vmatpush.msra.mxu0 0.0
    %285 = vmatpush.msra.mxu0 0.0
    %286 = vmatpush.msra.mxu0 0.0
    %287 = vmatpush.msra.mxu0 0.0
    %288 = vmatpush.msra.mxu0 0.0
    %289 = vmatpush.msra.mxu0 0.0
    %290 = vmatpush.msra.mxu0 0.0
    %291 = vmatpush.msra.mxu0 0.0
    %292 = vmatpush.msra.mxu0 0.0
    %293 = vmatpush.msra.mxu0 0.0
    %294 = vmatpush.msra.mxu0 0.0
    %295 = vmatpush.msra.mxu0 0.0
    %296 = vmatpush.msra.mxu0 0.0
    %297 = vmatpush.msra.mxu0 0.0
    %v298 = vand.u32 %v217, 4294901760
    %v299 = vsub.f32 %v217, %v298
    %300 = vmatpush.msra.mxu0 %v299
    %v301 = vand.u32 %v212, 4294901760
    %v302 = vsub.f32 %v212, %v301
    %303 = vmatmul.f32.gmra.mxu0 %v302
    %v304 = vpop.f32.mrf.mxu0
    %v305 = vadd.f32 %v277, %v304
    %v306 = vand.u32 %v215, 4294901760
    %v307 = vsub.f32 %v215, %v306
    %308 = vmatmul.f32.gmra.mxu0 %v307
    %v309 = vpop.f32.mrf.mxu0
    %v310 = vadd.f32 %v281, %v309
    %311 = vdwg.mxu0
    %312 = vmatpush.msra.mxu0 0.0
    %313 = vmatpush.msra.mxu0 0.0
    %314 = vmatpush.msra.mxu0 0.0
    %315 = vmatpush.msra.mxu0 0.0
    %316 = vmatpush.msra.mxu0 0.0
    %317 = vmatpush.msra.mxu0 0.0
    %318 = vmatpush.msra.mxu0 0.0
    %319 = vmatpush.msra.mxu0 0.0
    %320 = vmatpush.msra.mxu0 0.0
    %321 = vmatpush.msra.mxu0 0.0
    %322 = vmatpush.msra.mxu0 0.0
    %323 = vmatpush.msra.mxu0 0.0
    %324 = vmatpush.msra.mxu0 0.0
    %325 = vmatpush.msra.mxu0 0.0
    %326 = vmatpush.msra.mxu0 0.0
    %v327 = vand.u32 %v217, 4294901760
    %328 = vmatpush.msra.mxu0 %v327
    %v329 = vand.u32 %v212, 4294901760
    %v330 = vsub.f32 %v212, %v329
    %v331 = vand.u32 %v330, 4294901760
    %332 = vmatmul.f32.gmra.mxu0 %v331
    %v333 = vpop.f32.mrf.mxu0
    %v334 = vadd.f32 %v305, %v333
    %v335 = vand.u32 %v215, 4294901760
    %v336 = vsub.f32 %v215, %v335
    %v337 = vand.u32 %v336, 4294901760
    %338 = vmatmul.f32.gmra.mxu0 %v337
    %v339 = vpop.f32.mrf.mxu0
    %v340 = vadd.f32 %v310, %v339
    %341 = vdwg.mxu0
    %342 = vmatpush.msra.mxu0 0.0
    %343 = vmatpush.msra.mxu0 0.0
    %344 = vmatpush.msra.mxu0 0.0
    %345 = vmatpush.msra.mxu0 0.0
    %346 = vmatpush.msra.mxu0 0.0
    %347 = vmatpush.msra.mxu0 0.0
    %348 = vmatpush.msra.mxu0 0.0
    %349 = vmatpush.msra.mxu0 0.0
    %350 = vmatpush.msra.mxu0 0.0
    %351 = vmatpush.msra.mxu0 0.0
    %352 = vmatpush.msra.mxu0 0.0
    %353 = vmatpush.msra.mxu0 0.0
    %354 = vmatpush.msra.mxu0 0.0
    %355 = vmatpush.msra.mxu0 0.0
    %356 = vmatpush.msra.mxu0 0.0
    %v357 = vand.u32 %v217, 4294901760
    %v358 = vsub.f32 %v217, %v357
    %v359 = vand.u32 %v358, 4294901760
    %360 = vmatpush.msra.mxu0 %v359
    %v361 = vand.u32 %v212, 4294901760
    %362 = vmatmul.f32.gmra.mxu0 %v361
    %v363 = vpop.f32.mrf.mxu0
    %v364 = vadd.f32 %v334, %v363
    %v365 = vand.u32 %v215, 4294901760
    %366 = vmatmul.f32.gmra.mxu0 %v365
    %v367 = vpop.f32.mrf.mxu0
    %v368 = vadd.f32 %v340, %v367
    %369 = vdwg.mxu0
    %370 = vmatpush.msra.mxu0 0.0
    %371 = vmatpush.msra.mxu0 0.0
    %372 = vmatpush.msra.mxu0 0.0
    %373 = vmatpush.msra.mxu0 0.0
    %374 = vmatpush.msra.mxu0 0.0
    %375 = vmatpush.msra.mxu0 0.0
    %376 = vmatpush.msra.mxu0 0.0
    %377 = vmatpush.msra.mxu0 0.0
    %378 = vmatpush.msra.mxu0 0.0
    %379 = vmatpush.msra.mxu0 0.0
    %380 = vmatpush.msra.mxu0 0.0
    %381 = vmatpush.msra.mxu0 0.0
    %382 = vmatpush.msra.mxu0 0.0
    %383 = vmatpush.msra.mxu0 0.0
    %384 = vmatpush.msra.mxu0 0.0
    %v385 = vand.u32 %v217, 4294901760
    %386 = vmatpush.msra.mxu0 %v385
    %v387 = vand.u32 %v212, 4294901760
    %388 = vmatmul.f32.gmra.mxu0 %v387
    %v389 = vpop.f32.mrf.mxu0
    %v390 = vadd.f32 %v364, %v389
    %v391 = vand.u32 %v215, 4294901760
    %392 = vmatmul.f32.gmra.mxu0 %v391
    %v393 = vpop.f32.mrf.mxu0
    %v394 = vadd.f32 %v368, %v393
    %395 = vdwg.mxu0
    %396 = vst [vmem:[#allocation2] sm:$0xff] %v390
    %397 = vst [vmem:[#allocation2 + $0x8] sm:$0xff] %v394
    // Predicated region
    $region14: #{tpu_custom_call.1} parent=1 // pred_check
      _
    $region15: #{tpu_custom_call.1} parent=1 // pred_check_branch
      %399 = sbr.rel (0) target = $region17
    $region16: #{tpu_custom_call.1} parent=1 // pred_region
      %401 = vsyncadd [#allocation3], 0
      %s402 = sshll.u32 [#allocation2], 4
      %s403 = int_to_ptr.vmem [resolvable:$true] %s402
      %s404 = sshll.u32 %s3, 4
      %s405 = int_to_ptr.hbm [resolvable:$true] %s404
      %410 = dma.vmem_to_hbm [thread:$0]  %s403, 256, %s405, [#allocation3], 128, 128, 8
    $region17: #{tpu_custom_call.1} parent=1 // pred_fallthru
      _
    // Predicated region
    $region18: #{tpu_custom_call.1} parent=1 // pred_check
      _
    $region19: #{tpu_custom_call.1} parent=1 // pred_check_branch
      %412 = sbr.rel (0) target = $region21
    $region20: #{tpu_custom_call.1} parent=1 // pred_region
      %414 = dma.done [#allocation3], 256
    $region21: #{tpu_custom_call.1} parent=1 // pred_fallthru
      _
    %415 = vsyncpa [#allocation3], 1

</llo_original>
